<compile_context>
chip_gen: v7x
topology: tpu7x:2x2x1
jax: 0.10.0
libtpu: 0.0.40
codegen_flags: <defaults>
</compile_context>

<pallas_src>
import functools

import jax
import jax.numpy as jnp
from jax.experimental import pallas as pl
from jax.experimental.pallas import tpu as pltpu


def _round_up(n: int, m: int) -> int:
    return ((n + m - 1) // m) * m


def _ls2d_kernel(x_ref, slope_ref, o_ref, *, beta: float):
    # x_ref/o_ref: (tb, tf, tt)   slope_ref: (tf, 1)
    x = x_ref[...].astype(jnp.float32)
    s = slope_ref[...].astype(jnp.float32)
    y = jax.nn.sigmoid(s[None, :, :] * x)
    if beta != 1.0:  # trace-time constant; drop the vmul when beta == 1
        y = y * jnp.float32(beta)
    o_ref[...] = y.astype(o_ref.dtype)


_SMALL_BYTES = 512 * 1024          # single-block fast-path threshold
_BLOCK_ELEMS = 512 * 1024          # ~2 MiB per f32 block


def learnable_sigmoid_2d(x, slope, *, beta: float = 1.0):
    """beta * sigmoid(slope * x); x: (B, F, T), slope: (F, 1)."""
    B, F, T = x.shape
    assert slope.shape == (F, 1), slope.shape

    kernel = functools.partial(_ls2d_kernel, beta=beta)
    out_shape = jax.ShapeDtypeStruct((B, F, T), x.dtype)

    total_bytes = B * F * T * x.dtype.itemsize
    if total_bytes <= _SMALL_BYTES:
        # Small-input fast path: one full-array VMEM block, no grid, no padding.
        return pl.pallas_call(kernel, out_shape=out_shape)(x, slope)

    # ----- tiled path (no wrapper pad/slice; ragged edge blocks are masked) --
    # Lane axis: full T when it fits (full-extent dims are exempt from the 128
    # rule), otherwise a multiple of 128.
    tile_t = T if T <= 1024 else 1024
    # Sublane axis: target ~2 MiB f32 blocks; multiple of 8 unless it is the
    # full F extent.
    budget = max(8, _BLOCK_ELEMS // tile_t)
    tile_f = F if F <= budget else max(8, (budget // 8) * 8)

    def n_blocks(tf, tt):
        return B * pl.cdiv(F, tf) * pl.cdiv(T, tt)

    # v7x has 2 TensorCores: make sure the parallel grid has >= 2 blocks.
    if n_blocks(tile_f, tile_t) < 2:
        if F >= 16:
            tile_f = min(tile_f, _round_up(pl.cdiv(F, 2), 8))
        elif T >= 256:
            tile_t = min(tile_t, _round_up(pl.cdiv(T, 2), 128))

    grid = (B, pl.cdiv(F, tile_f), pl.cdiv(T, tile_t))
    return pl.pallas_call(
        kernel,
        grid=grid,
        in_specs=[
            pl.BlockSpec((1, tile_f, tile_t), lambda b, i, j: (b, i, j)),
            pl.BlockSpec((tile_f, 1), lambda b, i, j: (i, 0)),
        ],
        out_specs=pl.BlockSpec((1, tile_f, tile_t), lambda b, i, j: (b, i, j)),
        out_shape=out_shape,
        compiler_params=pltpu.CompilerParams(
            dimension_semantics=("parallel", "parallel", "parallel")),
    )(x, slope)


def _check(x, slope, beta):
    out = jax.jit(functools.partial(learnable_sigmoid_2d, beta=beta))(x, slope)
    out = jax.block_until_ready(out)
    ref = beta * jax.nn.sigmoid(slope[None, :, :].astype(jnp.float32)
                                * x.astype(jnp.float32))
    assert out.shape == x.shape, out.shape
    assert out.dtype == x.dtype, out.dtype
    assert bool(jnp.all(jnp.isfinite(out)))
    err = float(jnp.max(jnp.abs(out.astype(jnp.float32) - ref)))
    assert err < 1e-5, err


if __name__ == "__main__":
    key = jax.random.PRNGKey(0)
    k1, k2, k3, k4, k5, k6 = jax.random.split(key, 6)

    # Module-consistent small shapes: x = (batch, in_features, frames).
    B, F, T = 2, 33, 22
    x = jax.random.normal(k1, (B, F, T), jnp.float32)
    slope = 0.5 + jax.random.uniform(k2, (F, 1), jnp.float32)
    _check(x, slope, beta=1.0)                       # small fast path, beta skipped

    # Medium shape exercising the tiled path (full-extent F/T blocks).
    x_m = jax.random.normal(k3, (2, 200, 400), jnp.float32)
    s_m = 0.5 + jax.random.uniform(k4, (200, 1), jnp.float32)
    _check(x_m, s_m, beta=2.0)

    # Medium shape exercising ragged lane-edge blocks (T=1100 -> tile_t=1024).
    x_r = jax.random.normal(k5, (1, 300, 1100), jnp.float32)
    s_r = 0.5 + jax.random.uniform(k6, (300, 1), jnp.float32)
    _check(x_r, s_r, beta=1.0)

    print("KERNEL_OK")
</pallas_src>

<mosaic_0001>
module attributes {stable_mosaic.version = 11 : i64} {
  func.func @_ls2d_kernel(%arg0: memref<2x33x22xf32, #tpu.memory_space<vmem>>, %arg1: memref<33x1xf32, #tpu.memory_space<vmem>>, %arg2: memref<2x33x22xf32, #tpu.memory_space<vmem>>) attributes {dimension_semantics = [], scalar_prefetch = 0 : i64, scratch_operands = 0 : i64, tpu.core_type = #tpu.core_type<tc>} {
    %c0 = arith.constant 0 : index
    %c0_0 = arith.constant 0 : index
    %c0_1 = arith.constant 0 : index
    %0 = vector.load %arg0[%c0, %c0_0, %c0_1] : memref<2x33x22xf32, #tpu.memory_space<vmem>>, vector<2x33x22xf32>
    %c0_2 = arith.constant 0 : index
    %c0_3 = arith.constant 0 : index
    %1 = vector.load %arg1[%c0_2, %c0_3] : memref<33x1xf32, #tpu.memory_space<vmem>>, vector<33x1xf32>
    %2 = vector.shape_cast %1 : vector<33x1xf32> to vector<1x33x1xf32>
    %3 = vector.broadcast %2 : vector<1x33x1xf32> to vector<2x33x22xf32>
    %4 = arith.mulf %3, %0 : vector<2x33x22xf32>
    %5 = arith.negf %4 : vector<2x33x22xf32>
    %6 = math.exp %5 : vector<2x33x22xf32>
    %cst = arith.constant 1.000000e+00 : f32
    %7 = vector.broadcast %cst : f32 to vector<2x33x22xf32>
    %8 = arith.addf %7, %6 : vector<2x33x22xf32>
    %9 = arith.divf %7, %8 : vector<2x33x22xf32>
    %c0_4 = arith.constant 0 : index
    %c0_5 = arith.constant 0 : index
    %c0_6 = arith.constant 0 : index
    %10 = vector.load %arg2[%c0_4, %c0_5, %c0_6] : memref<2x33x22xf32, #tpu.memory_space<vmem>>, vector<2x33x22xf32>
    tpu.vector_store %arg2[%c0_4, %c0_5, %c0_6], %9 {strides = array<i32>} : memref<2x33x22xf32, #tpu.memory_space<vmem>>, vector<2x33x22xf32>,
    return
  }
}

</mosaic_0001>

<llo_original>
// kernel: learnable_sigmoid_2d.1
$region0: #{learnable_sigmoid_2d.1}
  #allocation0 [shape = 'u32[]', space=smem, size = 0x4, offset = 0x4, fixed_abs, tag = 'smem constant byte address 0x4 - core index']
  #allocation1 [shape = 'u32[144,128]{1,0:T(1,128)}', space=vmem, size = 0x12000, scoped, tag = 'internal scratch']
  %s0 = inlined_call_operand.vmem [shape: f32[2,33,22], index: 0, kind: input, shape index: {}]
  %s1 = inlined_call_operand.vmem [shape: f32[33,1], index: 1, kind: input, shape index: {}]
  %s2 = inlined_call_operand.vmem [shape: f32[2,33,22], index: 2, kind: output, shape index: {}]
  %s3 = sld [smem:[#allocation0]]
  $region18: #{learnable_sigmoid_2d.1} parent=0
    _
  %s5 = ssub.s32 1, %s3
  %s6 = scalar_select 0, %s5, %s3
  // Predicated region
  $region2: #{learnable_sigmoid_2d.1} parent=0 // pred_check
    _
  $region3: #{learnable_sigmoid_2d.1} parent=0 // pred_check_branch
    %8 = sbr.rel (0) target = $region5
  $region4: #{learnable_sigmoid_2d.1} parent=0 // pred_region
    _
  $region5: #{learnable_sigmoid_2d.1} parent=0 // pred_fallthru
    _
  // Predicated region
  $region6: #{learnable_sigmoid_2d.1} parent=0 // pred_check
    _
  $region7: #{learnable_sigmoid_2d.1} parent=0 // pred_check_branch
    %10 = sbr.rel (0) target = $region9
  $region8: #{learnable_sigmoid_2d.1} parent=0 // pred_region
    _
  $region9: #{learnable_sigmoid_2d.1} parent=0 // pred_fallthru
    _
  %v11 = vld [vmem:[%s0] sm:$0xff]
  %v12 = vld [vmem:[%s0 + $0x8] sm:$0xff]
  %v13 = vld [vmem:[%s0 + $0x10] sm:$0xff]
  %v14 = vld [vmem:[%s0 + $0x18] sm:$0xff]
  %v15 = vld [vmem:[%s0 + $0x20] sm:$0x1]
  %v16 = vld [vmem:[%s0 + $0x28] sm:$0xff]
  %v17 = vld [vmem:[%s0 + $0x30] sm:$0xff]
  %v18 = vld [vmem:[%s0 + $0x38] sm:$0xff]
  %v19 = vld [vmem:[%s0 + $0x40] sm:$0xff]
  %v20 = vld [vmem:[%s0 + $0x48] sm:$0x1]
  %v21 = vld [vmem:[%s1] sm:$0xff]
  %v22 = vld [vmem:[%s1 + $0x8] sm:$0xff]
  %v23 = vld [vmem:[%s1 + $0x10] sm:$0xff]
  %v24 = vld [vmem:[%s1 + $0x18] sm:$0xff]
  %v25 = vld [vmem:[%s1 + $0x20] sm:$0x1]
  %27 = vset.pattern.permute.xlu0 0
  %28 = vperm.xlu0 %27, %v21
  %v29 = vpop.permute.xlu0 %28
  %32 = vset.pattern.permute.xlu0 0
  %33 = vperm.xlu0 %32, %v22
  %v34 = vpop.permute.xlu0 %33
  %37 = vset.pattern.permute.xlu0 0
  %38 = vperm.xlu0 %37, %v23
  %v39 = vpop.permute.xlu0 %38
  %42 = vset.pattern.permute.xlu0 0
  %43 = vperm.xlu0 %42, %v24
  %v44 = vpop.permute.xlu0 %43
  %47 = vset.pattern.permute.xlu0 0
  %48 = vperm.xlu0 %47, %v25
  %v49 = vpop.permute.xlu0 %48
  %v51 = vmul.f32 %v29, %v11
  %v52 = vmul.f32 %v34, %v12
  %v53 = vmul.f32 %v39, %v13
  %v54 = vmul.f32 %v44, %v14
  %v55 = vmul.f32 %v49, %v15
  %v56 = vmul.f32 %v29, %v16
  %v57 = vmul.f32 %v34, %v17
  %v58 = vmul.f32 %v39, %v18
  %v59 = vmul.f32 %v44, %v19
  %v60 = vmul.f32 %v49, %v20
  %v61 = vxor.u32 %v51, 2147483648
  %v62 = vxor.u32 %v52, 2147483648
  %v63 = vxor.u32 %v53, 2147483648
  %v64 = vxor.u32 %v54, 2147483648
  %v65 = vxor.u32 %v55, 2147483648
  %v66 = vxor.u32 %v56, 2147483648
  %v67 = vxor.u32 %v57, 2147483648
  %v68 = vxor.u32 %v58, 2147483648
  %v69 = vxor.u32 %v59, 2147483648
  %v70 = vxor.u32 %v60, 2147483648
  %v71 = vmul.f32 %v61, 1.442695
  %v72 = vpow.pop %v71
  %v73 = vmul.f32 %v62, 1.442695
  %v74 = vpow.pop %v73
  %v75 = vmul.f32 %v63, 1.442695
  %v76 = vpow.pop %v75
  %v77 = vmul.f32 %v64, 1.442695
  %v78 = vpow.pop %v77
  %v79 = vmul.f32 %v65, 1.442695
  %v80 = vpow.pop %v79
  %v81 = vmul.f32 %v66, 1.442695
  %v82 = vpow.pop %v81
  %v83 = vmul.f32 %v67, 1.442695
  %v84 = vpow.pop %v83
  %v85 = vmul.f32 %v68, 1.442695
  %v86 = vpow.pop %v85
  %v87 = vmul.f32 %v69, 1.442695
  %v88 = vpow.pop %v87
  %v89 = vmul.f32 %v70, 1.442695
  %v90 = vpow.pop %v89
  %v91 = vadd.f32 %v72, 1.0
  %v92 = vadd.f32 %v74, 1.0
  %v93 = vadd.f32 %v76, 1.0
  %v94 = vadd.f32 %v78, 1.0
  %v95 = vadd.f32 %v80, 1.0
  %v96 = vadd.f32 %v82, 1.0
  %v97 = vadd.f32 %v84, 1.0
  %v98 = vadd.f32 %v86, 1.0
  %v99 = vadd.f32 %v88, 1.0
  %v100 = vadd.f32 %v90, 1.0
  %v101 = vrcp.pop %v91
  %v102 = vmul.f32 1.0, %v101
  %v103 = vrcp.pop %v92
  %v104 = vmul.f32 1.0, %v103
  %v105 = vrcp.pop %v93
  %v106 = vmul.f32 1.0, %v105
  %v107 = vrcp.pop %v94
  %v108 = vmul.f32 1.0, %v107
  %v109 = vrcp.pop %v95
  %v110 = vmul.f32 1.0, %v109
  %v111 = vrcp.pop %v96
  %v112 = vmul.f32 1.0, %v111
  %v113 = vrcp.pop %v97
  %v114 = vmul.f32 1.0, %v113
  %v115 = vrcp.pop %v98
  %v116 = vmul.f32 1.0, %v115
  %v117 = vrcp.pop %v99
  %v118 = vmul.f32 1.0, %v117
  %v119 = vrcp.pop %v100
  %v120 = vmul.f32 1.0, %v119
  %vm121 = vcmask 179200
  %122 = vst.msk [vmem:[%s2] sm:$0xff] %vm121, %v102
  %123 = vst.msk [vmem:[%s2 + $0x8] sm:$0xff] %vm121, %v104
  %124 = vst.msk [vmem:[%s2 + $0x10] sm:$0xff] %vm121, %v106
  %125 = vst.msk [vmem:[%s2 + $0x18] sm:$0xff] %vm121, %v108
  %vm126 = vcmask 172032
  %127 = vst.msk [vmem:[%s2 + $0x20] sm:$0x1] %vm126, %v110
  %128 = vst.msk [vmem:[%s2 + $0x28] sm:$0xff] %vm121, %v112
  %129 = vst.msk [vmem:[%s2 + $0x30] sm:$0xff] %vm121, %v114
  %130 = vst.msk [vmem:[%s2 + $0x38] sm:$0xff] %vm121, %v116
  %131 = vst.msk [vmem:[%s2 + $0x40] sm:$0xff] %vm121, %v118
  %132 = vst.msk [vmem:[%s2 + $0x48] sm:$0x1] %vm126, %v120
  // Predicated region
  $region10: #{learnable_sigmoid_2d.1} parent=0 // pred_check
    _
  $region11: #{learnable_sigmoid_2d.1} parent=0 // pred_check_branch
    %134 = sbr.rel (0) target = $region13
  $region12: #{learnable_sigmoid_2d.1} parent=0 // pred_region
    _
  $region13: #{learnable_sigmoid_2d.1} parent=0 // pred_fallthru
    _
  // Predicated region
  $region14: #{learnable_sigmoid_2d.1} parent=0 // pred_check
    _
  $region15: #{learnable_sigmoid_2d.1} parent=0 // pred_check_branch
    %136 = sbr.rel (0) target = $region17
  $region16: #{learnable_sigmoid_2d.1} parent=0 // pred_region
    _
  $region17: #{learnable_sigmoid_2d.1} parent=0 // pred_fallthru
    _

</llo_original>
